<compile_context>
chip_gen: v7x
topology: tpu7x:2x2x1
jax: 0.10.0
libtpu: 0.0.40
codegen_flags: <defaults>
</compile_context>

<pallas_src>
import functools

import jax
import jax.numpy as jnp
from jax.experimental import pallas as pl
from jax.experimental.pallas import tpu as pltpu

HIDDEN1 = 128
HIDDEN2 = 64


def _mlp_kernel_vec_out(x_ref, w1_ref, b1_ref, w2_ref, b2_ref, w3r_ref, b3_ref,
                        o_ref):
    """output_dim == 1 fast path: fc3 as a VPU/XLU reduction, not an N=1 matmul."""
    # fc1: bf16 MXU matmul, f32 accumulate; bias/ReLU in f32.
    h1 = jnp.dot(x_ref[...], w1_ref[...], preferred_element_type=jnp.float32)
    h1 = jnp.maximum(h1 + b1_ref[...], 0.0)
    # fc2
    h2 = jnp.dot(h1.astype(jnp.bfloat16), w2_ref[...],
                 preferred_element_type=jnp.float32)
    h2 = jnp.maximum(h2 + b2_ref[...], 0.0)
    # fc3 (out=1): multiply by the (1, 64) weight row and reduce over lanes.
    z = jnp.sum(h2 * w3r_ref[...], axis=-1, keepdims=True) + b3_ref[...]
    # NOTE: last output dim == 1 -> masked vst; tiny vs. the matmuls at large tile_b.
    o_ref[...] = jax.nn.sigmoid(z)


def _mlp_kernel_mat_out(x_ref, w1_ref, b1_ref, w2_ref, b2_ref, w3_ref, b3_ref,
                        o_ref):
    """General output_dim > 1 path (fc3 on the MXU)."""
    h1 = jnp.dot(x_ref[...], w1_ref[...], preferred_element_type=jnp.float32)
    h1 = jnp.maximum(h1 + b1_ref[...], 0.0)
    h2 = jnp.dot(h1.astype(jnp.bfloat16), w2_ref[...],
                 preferred_element_type=jnp.float32)
    h2 = jnp.maximum(h2 + b2_ref[...], 0.0)
    z = jnp.dot(h2.astype(jnp.bfloat16), w3_ref[...],
                preferred_element_type=jnp.float32) + b3_ref[...]
    o_ref[...] = jax.nn.sigmoid(z)


def _choose_tile_b(B, input_dim):
    """Large, MXU-row-multiple, VMEM-budgeted batch tile."""
    # Double-buffered bf16 x tile: 2 * tile_b * input_dim * 2B <= ~8 MiB
    # (leaves plenty of headroom under the 32 MiB default scoped VMEM, and
    #  under v7x's 64 MiB physical VMEM even at NumerAI-scale feature counts).
    vmem_cap = (8 << 20) // max(4 * input_dim, 1)
    vmem_cap = max(256, (vmem_cap // 256) * 256)
    tile_b = min(1024, vmem_cap)
    if B >= 512:
        # Keep >= 2 grid steps so the batch axis can shard across v7x's 2 TCs.
        while tile_b > 256 and 2 * tile_b > B:
            tile_b //= 2
    if B < tile_b:
        # Tiny batch: single (padded) block; launch-latency bound anyway.
        tile_b = max(8, -(-B // 8) * 8)
    return tile_b


@functools.partial(jax.jit, static_argnames=("tile_b",))
def meta_model_forward(x, params, *, tile_b=None):
    """Fused MLP forward. x: (B, input_dim) float32. Returns (B, output_dim) f32."""
    w1, b1, w2, b2, w3, b3 = params
    B, input_dim = x.shape
    output_dim = w3.shape[1]

    if tile_b is None:
        tile_b = _choose_tile_b(B, input_dim)
    tile_b = int(tile_b)

    # Pad ragged batches to a tile_b multiple (zeros; sliced off below).
    B_pad = -(-B // tile_b) * tile_b
    if B_pad != B:
        x = jnp.pad(x, ((0, B_pad - B), (0, 0)))

    # bf16 inputs for the MXU (f32 accumulation inside the kernel); biases stay f32.
    x_in = x.astype(jnp.bfloat16)
    w1_in = w1.astype(jnp.bfloat16)
    w2_in = w2.astype(jnp.bfloat16)
    if output_dim == 1:
        kernel = _mlp_kernel_vec_out
        w3_in = w3.reshape(1, HIDDEN2).astype(jnp.float32)  # (1, 64) row, f32
    else:
        kernel = _mlp_kernel_mat_out
        w3_in = w3.astype(jnp.bfloat16)

    weight_args = (w1_in, b1, w2_in, b2, w3_in, b3)

    # Weights/biases (<~1 MiB total) stay fully resident: constant index maps mean
    # the pipeline revisits the same block and does not re-DMA them per grid step.
    def full(arr):
        return pl.BlockSpec(arr.shape, lambda i: (0,) * arr.ndim)

    grid = (B_pad // tile_b,)

    flops = 2 * B_pad * (input_dim * HIDDEN1 + HIDDEN1 * HIDDEN2
                         + HIDDEN2 * output_dim)
    bytes_accessed = int(
        x_in.size * x_in.dtype.itemsize
        + sum(a.size * a.dtype.itemsize for a in weight_args)
        + B_pad * output_dim * 4)

    out = pl.pallas_call(
        kernel,
        out_shape=jax.ShapeDtypeStruct((B_pad, output_dim), jnp.float32),
        grid=grid,
        in_specs=[
            pl.BlockSpec((tile_b, input_dim), lambda i: (i, 0)),  # x tile
            full(w1_in), full(b1),
            full(w2_in), full(b2),
            full(w3_in), full(b3),
        ],
        out_specs=pl.BlockSpec((tile_b, output_dim), lambda i: (i, 0)),
        compiler_params=pltpu.CompilerParams(
            dimension_semantics=("parallel",)),
        cost_estimate=pl.CostEstimate(
            flops=flops,
            transcendentals=B_pad * output_dim,
            bytes_accessed=bytes_accessed),
    )(x_in, *weight_args)

    return out[:B]


def init_params(key, input_dim, output_dim):
    """Deterministic PyTorch-style (uniform +-1/sqrt(fan_in)) init, f32."""
    ks = jax.random.split(key, 6)

    def linear(kw, kb, fan_in, fan_out):
        bound = 1.0 / jnp.sqrt(fan_in)
        w = jax.random.uniform(kw, (fan_in, fan_out), jnp.float32, -bound, bound)
        b = jax.random.uniform(kb, (1, fan_out), jnp.float32, -bound, bound)
        return w, b

    w1, b1 = linear(ks[0], ks[1], input_dim, HIDDEN1)
    w2, b2 = linear(ks[2], ks[3], HIDDEN1, HIDDEN2)
    w3, b3 = linear(ks[4], ks[5], HIDDEN2, output_dim)
    return (w1, b1, w2, b2, w3, b3)


def reference_forward_f32(x, params):
    w1, b1, w2, b2, w3, b3 = params
    h1 = jnp.maximum(x @ w1 + b1, 0.0)
    h2 = jnp.maximum(h1 @ w2 + b2, 0.0)
    return jax.nn.sigmoid(h2 @ w3 + b3)


def reference_forward_bf16(x, params):
    """Matches the kernel's bf16-matmul / f32-accumulate numerics."""
    w1, b1, w2, b2, w3, b3 = params
    h1 = jnp.dot(x.astype(jnp.bfloat16), w1.astype(jnp.bfloat16),
                 preferred_element_type=jnp.float32)
    h1 = jnp.maximum(h1 + b1, 0.0)
    h2 = jnp.dot(h1.astype(jnp.bfloat16), w2.astype(jnp.bfloat16),
                 preferred_element_type=jnp.float32)
    h2 = jnp.maximum(h2 + b2, 0.0)
    if w3.shape[1] == 1:
        z = jnp.sum(h2 * w3.reshape(1, -1), axis=-1, keepdims=True) + b3
    else:
        z = jnp.dot(h2.astype(jnp.bfloat16), w3.astype(jnp.bfloat16),
                    preferred_element_type=jnp.float32) + b3
    return jax.nn.sigmoid(z)


# TODO(synk): distribution_similarity (cosine similarity of feature means) is not
# part of forward(); it stays in plain JAX if ever needed.

if __name__ == "__main__":
    key = jax.random.PRNGKey(0)
    k_x, k_p = jax.random.split(key)

    batch = 16
    input_dim = 32    # small stand-in for the NumerAI feature count
    output_dim = 1

    x = jax.random.normal(k_x, (batch, input_dim), jnp.float32)
    params = init_params(k_p, input_dim, output_dim)

    out = meta_model_forward(x, params)
    out = jax.block_until_ready(out)
    assert out.shape == (batch, output_dim)

    ref_bf16 = reference_forward_bf16(x, params)
    ref_f32 = reference_forward_f32(x, params)
    assert jnp.allclose(out, ref_bf16, atol=1e-4, rtol=1e-4), \
        float(jnp.max(jnp.abs(out - ref_bf16)))
    assert jnp.allclose(out, ref_f32, atol=2e-2, rtol=0.0), \
        float(jnp.max(jnp.abs(out - ref_f32)))

    print("KERNEL_OK")
</pallas_src>

<mosaic_0001>
module attributes {stable_mosaic.version = 11 : i64} {
  func.func @_mlp_kernel_vec_out(%arg0: i32, %arg1: memref<16x32xbf16, #tpu.memory_space<vmem>>, %arg2: memref<32x128xbf16, #tpu.memory_space<vmem>>, %arg3: memref<1x128xf32, #tpu.memory_space<vmem>>, %arg4: memref<128x64xbf16, #tpu.memory_space<vmem>>, %arg5: memref<1x64xf32, #tpu.memory_space<vmem>>, %arg6: memref<1x64xf32, #tpu.memory_space<vmem>>, %arg7: memref<1x1xf32, #tpu.memory_space<vmem>>, %arg8: memref<16x1xf32, #tpu.memory_space<vmem>>) attributes {dimension_semantics = [#tpu.dimension_semantics<parallel>], iteration_bounds = array<i64: 1>, scalar_prefetch = 0 : i64, scratch_operands = 0 : i64, tpu.core_type = #tpu.core_type<tc>, window_params = [{transform_indices = @transform_0, window_bounds = array<i64: 16, 32>}, {pipeline_mode = #tpu.pipeline_mode<synchronous>, transform_indices = @transform_1, window_bounds = array<i64: 32, 128>}, {pipeline_mode = #tpu.pipeline_mode<synchronous>, transform_indices = @transform_2, window_bounds = array<i64: 1, 128>}, {pipeline_mode = #tpu.pipeline_mode<synchronous>, transform_indices = @transform_3, window_bounds = array<i64: 128, 64>}, {pipeline_mode = #tpu.pipeline_mode<synchronous>, transform_indices = @transform_4, window_bounds = array<i64: 1, 64>}, {pipeline_mode = #tpu.pipeline_mode<synchronous>, transform_indices = @transform_5, window_bounds = array<i64: 1, 64>}, {pipeline_mode = #tpu.pipeline_mode<synchronous>, transform_indices = @transform_6, window_bounds = array<i64: 1, 1>}, {transform_indices = @transform_7, window_bounds = array<i64: 16, 1>}]} {
    %c0 = arith.constant 0 : index
    %c0_0 = arith.constant 0 : index
    %0 = vector.load %arg1[%c0, %c0_0] : memref<16x32xbf16, #tpu.memory_space<vmem>>, vector<16x32xbf16>
    %c0_1 = arith.constant 0 : index
    %c0_2 = arith.constant 0 : index
    %1 = vector.load %arg2[%c0_1, %c0_2] : memref<32x128xbf16, #tpu.memory_space<vmem>>, vector<32x128xbf16>
    %cst = arith.constant dense<0.000000e+00> : vector<16x128xf32>
    %2 = tpu.matmul %0, %1, %cst {dimension_numbers = #tpu.dot_dimension_numbers<[1], [0], [0], [1], [0, 0, 1, 1], [], []>} : vector<16x32xbf16>, vector<32x128xbf16>, vector<16x128xf32> -> vector<16x128xf32>
    %c0_3 = arith.constant 0 : index
    %c0_4 = arith.constant 0 : index
    %3 = vector.load %arg3[%c0_3, %c0_4] : memref<1x128xf32, #tpu.memory_space<vmem>>, vector<1x128xf32>
    %4 = vector.broadcast %3 : vector<1x128xf32> to vector<16x128xf32>
    %5 = arith.addf %2, %4 : vector<16x128xf32>
    %cst_5 = arith.constant 0.000000e+00 : f32
    %6 = vector.broadcast %cst_5 : f32 to vector<16x128xf32>
    %7 = arith.maximumf %5, %6 : vector<16x128xf32>
    %8 = arith.truncf %7 : vector<16x128xf32> to vector<16x128xbf16>
    %c0_6 = arith.constant 0 : index
    %c0_7 = arith.constant 0 : index
    %9 = vector.load %arg4[%c0_6, %c0_7] : memref<128x64xbf16, #tpu.memory_space<vmem>>, vector<128x64xbf16>
    %cst_8 = arith.constant dense<0.000000e+00> : vector<16x64xf32>
    %10 = tpu.matmul %8, %9, %cst_8 {dimension_numbers = #tpu.dot_dimension_numbers<[1], [0], [0], [1], [0, 0, 1, 1], [], []>} : vector<16x128xbf16>, vector<128x64xbf16>, vector<16x64xf32> -> vector<16x64xf32>
    %c0_9 = arith.constant 0 : index
    %c0_10 = arith.constant 0 : index
    %11 = vector.load %arg5[%c0_9, %c0_10] : memref<1x64xf32, #tpu.memory_space<vmem>>, vector<1x64xf32>
    %12 = vector.broadcast %11 : vector<1x64xf32> to vector<16x64xf32>
    %13 = arith.addf %10, %12 : vector<16x64xf32>
    %cst_11 = arith.constant 0.000000e+00 : f32
    %14 = vector.broadcast %cst_11 : f32 to vector<16x64xf32>
    %15 = arith.maximumf %13, %14 : vector<16x64xf32>
    %c0_12 = arith.constant 0 : index
    %c0_13 = arith.constant 0 : index
    %16 = vector.load %arg6[%c0_12, %c0_13] : memref<1x64xf32, #tpu.memory_space<vmem>>, vector<1x64xf32>
    %17 = vector.broadcast %16 : vector<1x64xf32> to vector<16x64xf32>
    %18 = arith.mulf %15, %17 : vector<16x64xf32>
    %cst_14 = arith.constant dense<0.000000e+00> : vector<16xf32>
    %19 = vector.multi_reduction <add>, %18, %cst_14 [1] : vector<16x64xf32> to vector<16xf32>
    %20 = vector.shape_cast %19 : vector<16xf32> to vector<16x1xf32>
    %c0_15 = arith.constant 0 : index
    %c0_16 = arith.constant 0 : index
    %21 = vector.load %arg7[%c0_15, %c0_16] : memref<1x1xf32, #tpu.memory_space<vmem>>, vector<1x1xf32>
    %22 = vector.broadcast %21 : vector<1x1xf32> to vector<16x1xf32>
    %23 = arith.addf %20, %22 : vector<16x1xf32>
    %24 = arith.negf %23 : vector<16x1xf32>
    %25 = math.exp %24 : vector<16x1xf32>
    %cst_17 = arith.constant 1.000000e+00 : f32
    %26 = vector.broadcast %cst_17 : f32 to vector<16x1xf32>
    %27 = arith.addf %26, %25 : vector<16x1xf32>
    %28 = arith.divf %26, %27 : vector<16x1xf32>
    %c0_18 = arith.constant 0 : index
    %c0_19 = arith.constant 0 : index
    %29 = vector.load %arg8[%c0_18, %c0_19] : memref<16x1xf32, #tpu.memory_space<vmem>>, vector<16x1xf32>
    tpu.vector_store %arg8[%c0_18, %c0_19], %28 {strides = array<i32>} : memref<16x1xf32, #tpu.memory_space<vmem>>, vector<16x1xf32>,
    return
  }
  func.func @transform_0(%arg0: i32) -> (i32, i32) {
    %c0_i32 = arith.constant 0 : i32
    %c0_i32_0 = arith.constant 0 : i32
    return %arg0, %c0_i32 : i32, i32
  }
  func.func @transform_1(%arg0: i32) -> (i32, i32) {
    %c0_i32 = arith.constant 0 : i32
    %c0_i32_0 = arith.constant 0 : i32
    %c0_i32_1 = arith.constant 0 : i32
    return %c0_i32, %c0_i32_0 : i32, i32
  }
  func.func @transform_2(%arg0: i32) -> (i32, i32) {
    %c0_i32 = arith.constant 0 : i32
    %c0_i32_0 = arith.constant 0 : i32
    %c0_i32_1 = arith.constant 0 : i32
    return %c0_i32, %c0_i32_0 : i32, i32
  }
  func.func @transform_3(%arg0: i32) -> (i32, i32) {
    %c0_i32 = arith.constant 0 : i32
    %c0_i32_0 = arith.constant 0 : i32
    %c0_i32_1 = arith.constant 0 : i32
    return %c0_i32, %c0_i32_0 : i32, i32
  }
  func.func @transform_4(%arg0: i32) -> (i32, i32) {
    %c0_i32 = arith.constant 0 : i32
    %c0_i32_0 = arith.constant 0 : i32
    %c0_i32_1 = arith.constant 0 : i32
    return %c0_i32, %c0_i32_0 : i32, i32
  }
  func.func @transform_5(%arg0: i32) -> (i32, i32) {
    %c0_i32 = arith.constant 0 : i32
    %c0_i32_0 = arith.constant 0 : i32
    %c0_i32_1 = arith.constant 0 : i32
    return %c0_i32, %c0_i32_0 : i32, i32
  }
  func.func @transform_6(%arg0: i32) -> (i32, i32) {
    %c0_i32 = arith.constant 0 : i32
    %c0_i32_0 = arith.constant 0 : i32
    %c0_i32_1 = arith.constant 0 : i32
    return %c0_i32, %c0_i32_0 : i32, i32
  }
  func.func @transform_7(%arg0: i32) -> (i32, i32) {
    %c0_i32 = arith.constant 0 : i32
    %c0_i32_0 = arith.constant 0 : i32
    return %arg0, %c0_i32 : i32, i32
  }
}

</mosaic_0001>

<llo_original>
// kernel: meta_model_forward.1
$region0: #{meta_model_forward.1}
  #allocation0 [shape = 'u32[]', space=smem, size = 0x4, offset = 0x4, fixed_abs, tag = 'smem constant byte address 0x4 - core index']
  #allocation1 [shape = 'u32[144,128]{1,0:T(1,128)}', space=vmem, size = 0x12000, scoped, tag = 'internal scratch']
  #allocation2 [shape = 'f32[1,1]{1,0:T(1,128)S(1)}', space=vmem, size = 0x200, scoped, tag = 'scoped memory for meta_model_forward.1']
  %s0 = inlined_call_operand.vmem [shape: bf16[16,32], index: 0, kind: input, shape index: {}]
  %s1 = inlined_call_operand.vmem [shape: bf16[32,128], index: 1, kind: input, shape index: {}]
  %s2 = inlined_call_operand.vmem [shape: f32[1,128], index: 2, kind: input, shape index: {}]
  %s3 = inlined_call_operand.vmem [shape: bf16[128,64], index: 3, kind: input, shape index: {}]
  %s4 = inlined_call_operand.vmem [shape: f32[1,64], index: 4, kind: input, shape index: {}]
  %s5 = inlined_call_operand.vmem [shape: f32[1,64], index: 5, kind: input, shape index: {}]
  %s6 = inlined_call_operand.<no memory space> [shape: f32[1,1], index: 6, kind: input, shape index: {}]
  %s7 = inlined_call_operand.vmem [shape: f32[16,1], index: 7, kind: output, shape index: {}]
  %s8 = sld [smem:[#allocation0]]
  $region38: #{meta_model_forward.1} parent=0
    _
  %s10 = ssub.s32 1, %s8
  %s11 = scalar_select 0, %s10, %s8
  %v12 = vstv %s6
  %13 = vst [vmem:[#allocation2] sm:$0x1] %v12
  // Predicated region
  $region2: #{meta_model_forward.1} parent=0 // pred_check
    _
  $region3: #{meta_model_forward.1} parent=0 // pred_check_branch
    %15 = sbr.rel (0) target = $region5
  $region4: #{meta_model_forward.1} parent=0 // pred_region
    _
  $region5: #{meta_model_forward.1} parent=0 // pred_fallthru
    _
  // Predicated region
  $region6: #{meta_model_forward.1} parent=0 // pred_check
    _
  $region7: #{meta_model_forward.1} parent=0 // pred_check_branch
    %17 = sbr.rel (0) target = $region9
  $region8: #{meta_model_forward.1} parent=0 // pred_region
    _
  $region9: #{meta_model_forward.1} parent=0 // pred_fallthru
    _
  // Predicated region
  $region10: #{meta_model_forward.1} parent=0 // pred_check
    _
  $region11: #{meta_model_forward.1} parent=0 // pred_check_branch
    %19 = sbr.rel (0) target = $region13
  $region12: #{meta_model_forward.1} parent=0 // pred_region
    _
  $region13: #{meta_model_forward.1} parent=0 // pred_fallthru
    _
  // Predicated region
  $region14: #{meta_model_forward.1} parent=0 // pred_check
    _
  $region15: #{meta_model_forward.1} parent=0 // pred_check_branch
    %21 = sbr.rel (0) target = $region17
  $region16: #{meta_model_forward.1} parent=0 // pred_region
    _
  $region17: #{meta_model_forward.1} parent=0 // pred_fallthru
    _
  // Predicated region
  $region18: #{meta_model_forward.1} parent=0 // pred_check
    _
  $region19: #{meta_model_forward.1} parent=0 // pred_check_branch
    %23 = sbr.rel (0) target = $region21
  $region20: #{meta_model_forward.1} parent=0 // pred_region
    _
  $region21: #{meta_model_forward.1} parent=0 // pred_fallthru
    _
  // Predicated region
  $region22: #{meta_model_forward.1} parent=0 // pred_check
    _
  $region23: #{meta_model_forward.1} parent=0 // pred_check_branch
    %25 = sbr.rel (0) target = $region25
  $region24: #{meta_model_forward.1} parent=0 // pred_region
    _
  $region25: #{meta_model_forward.1} parent=0 // pred_fallthru
    _
  // Predicated region
  $region26: #{meta_model_forward.1} parent=0 // pred_check
    _
  $region27: #{meta_model_forward.1} parent=0 // pred_check_branch
    %27 = sbr.rel (0) target = $region29
  $region28: #{meta_model_forward.1} parent=0 // pred_region
    _
  $region29: #{meta_model_forward.1} parent=0 // pred_fallthru
    _
  %v29 = vld [vmem:[%s0] sm:$0xf]
  %v30 = vld [vmem:[%s0 + $0x4] sm:$0xf]
  %v31 = vld [vmem:[%s1] sm:$0xf]
  %v32 = vld [vmem:[%s1 + $0x4] sm:$0xf]
  %v33 = vld [vmem:[%s1 + $0x8] sm:$0xf]
  %v34 = vld [vmem:[%s1 + $0xc] sm:$0xf]
  %v35 = vld [vmem:[%s2] sm:$0x1]
  %v37 = vlaneseq
  %v38 = vshrl.u32 %v37, 7
  %v39 = vsub.s32 0, %v38
  %v40 = vrot.slane %v35, %v39
  %v44 = vunpack.c.l.b16 %v29
  %v45 = vunpack.c.l.b16 %v30
  %v46 = vpack.c.b16 %v45, %v44
  %v51 = vunpack.c.l.b16 %v31
  %v52 = vunpack.c.l.b16 %v32
  %v53 = vunpack.c.l.b16 %v33
  %v54 = vunpack.c.l.b16 %v34
  %v55 = vpack.c.b16 %v52, %v51
  %v56 = vpack.c.b16 %v54, %v53
  %vm59 = vcmask 261120
  %v61 = vsel %vm59, %v46, 0
  %63 = vmatprep.subr.bf16.mxu0 0
  %64 = vmatpush1.bf16.msra.mxu0 %v55
  %65 = vmatprep.subr.bf16.mxu0 0
  %66 = vmatpush1.bf16.msra.mxu0 %v56
  %67 = vmatprep.subr.bf16.mxu0 0
  %68 = vmatpush1.bf16.msra.mxu0 0
  %69 = vmatprep.subr.bf16.mxu0 0
  %70 = vmatpush1.bf16.msra.mxu0 0
  %71 = vmatprep.subr.bf16.mxu0 0
  %72 = vmatpush1.bf16.msra.mxu0 0
  %73 = vmatprep.subr.bf16.mxu0 0
  %74 = vmatpush1.bf16.msra.mxu0 0
  %75 = vmatprep.subr.bf16.mxu0 0
  %76 = vmatpush1.bf16.msra.mxu0 0
  %77 = vmatprep.subr.bf16.mxu0 0
  %78 = vmatpush1.bf16.msra.mxu0 0
  %79 = vmatprep.subr.bf16.mxu0 0
  %80 = vmatpush1.bf16.msra.mxu0 0
  %81 = vmatprep.subr.bf16.mxu0 0
  %82 = vmatpush1.bf16.msra.mxu0 0
  %83 = vmatprep.subr.bf16.mxu0 0
  %84 = vmatpush1.bf16.msra.mxu0 0
  %85 = vmatprep.subr.bf16.mxu0 0
  %86 = vmatpush1.bf16.msra.mxu0 0
  %87 = vmatprep.subr.bf16.mxu0 0
  %88 = vmatpush1.bf16.msra.mxu0 0
  %89 = vmatprep.subr.bf16.mxu0 0
  %90 = vmatpush1.bf16.msra.mxu0 0
  %91 = vmatprep.subr.bf16.mxu0 0
  %92 = vmatpush1.bf16.msra.mxu0 0
  %93 = vmatprep.subr.bf16.mxu0 0
  %94 = vmatpush1.bf16.msra.mxu0 0
  %95 = vmatprep.mubr.bf16.mxu0 0
  %96 = vmatmul.mubr.bf16.gmra.mrb[0].mxu0 %v61
  %v97 = vpop.f32.mrb[0].mxu0
  %v98 = vadd.f32 %v40, %v97
  %v99 = vpop.f32.mrb[0].mxu0
  %v100 = vpop.f32.mrb[0].mxu0
  %v101 = vadd.f32 %v40, %v100
  %v102 = vpop.f32.mrb[0].mxu0
  %103 = vdwg.mxu0
  %v104 = vmax.f32 %v98, 0.0
  %v105 = vmax.f32 %v101, 0.0
  %v106 = vpack.c.bf16 %v105, %v104
  %v107 = vld [vmem:[%s3] sm:$0xf]
  %v108 = vld [vmem:[%s3 + $0x4] sm:$0xf]
  %v109 = vld [vmem:[%s3 + $0x8] sm:$0xf]
  %v110 = vld [vmem:[%s3 + $0xc] sm:$0xf]
  %v111 = vld [vmem:[%s3 + $0x10] sm:$0xf]
  %v112 = vld [vmem:[%s3 + $0x14] sm:$0xf]
  %v113 = vld [vmem:[%s3 + $0x18] sm:$0xf]
  %v114 = vld [vmem:[%s3 + $0x1c] sm:$0xf]
  %v115 = vld [vmem:[%s3 + $0x20] sm:$0xf]
  %v116 = vld [vmem:[%s3 + $0x24] sm:$0xf]
  %v117 = vld [vmem:[%s3 + $0x28] sm:$0xf]
  %v118 = vld [vmem:[%s3 + $0x2c] sm:$0xf]
  %v119 = vld [vmem:[%s3 + $0x30] sm:$0xf]
  %v120 = vld [vmem:[%s3 + $0x34] sm:$0xf]
  %v121 = vld [vmem:[%s3 + $0x38] sm:$0xf]
  %v122 = vld [vmem:[%s3 + $0x3c] sm:$0xf]
  %v123 = vld [vmem:[%s4] sm:$0x1]
  %v125 = vlaneseq
  %v126 = vshrl.u32 %v125, 7
  %v127 = vsub.s32 0, %v126
  %v128 = vrot.slane %v123, %v127
  %v146 = vunpack.c.l.b16 %v107
  %v147 = vunpack.c.l.b16 %v108
  %v148 = vunpack.c.l.b16 %v109
  %v149 = vunpack.c.l.b16 %v110
  %v150 = vunpack.c.l.b16 %v111
  %v151 = vunpack.c.l.b16 %v112
  %v152 = vunpack.c.l.b16 %v113
  %v153 = vunpack.c.l.b16 %v114
  %v154 = vunpack.c.l.b16 %v115
  %v155 = vunpack.c.l.b16 %v116
  %v156 = vunpack.c.l.b16 %v117
  %v157 = vunpack.c.l.b16 %v118
  %v158 = vunpack.c.l.b16 %v119
  %v159 = vunpack.c.l.b16 %v120
  %v160 = vunpack.c.l.b16 %v121
  %v161 = vunpack.c.l.b16 %v122
  %v162 = vpack.c.b16 %v147, %v146
  %v163 = vpack.c.b16 %v149, %v148
  %v164 = vpack.c.b16 %v151, %v150
  %v165 = vpack.c.b16 %v153, %v152
  %v166 = vpack.c.b16 %v155, %v154
  %v167 = vpack.c.b16 %v157, %v156
  %v168 = vpack.c.b16 %v159, %v158
  %v169 = vpack.c.b16 %v161, %v160
  %178 = vmatprep.subr.bf16.mxu0 0
  %179 = vmatpush1.bf16.msra.mxu0 %v162
  %180 = vmatprep.subr.bf16.mxu0 0
  %181 = vmatpush1.bf16.msra.mxu0 %v163
  %182 = vmatprep.subr.bf16.mxu0 0
  %183 = vmatpush1.bf16.msra.mxu0 %v164
  %184 = vmatprep.subr.bf16.mxu0 0
  %185 = vmatpush1.bf16.msra.mxu0 %v165
  %186 = vmatprep.subr.bf16.mxu0 0
  %187 = vmatpush1.bf16.msra.mxu0 %v166
  %188 = vmatprep.subr.bf16.mxu0 0
  %189 = vmatpush1.bf16.msra.mxu0 %v167
  %190 = vmatprep.subr.bf16.mxu0 0
  %191 = vmatpush1.bf16.msra.mxu0 %v168
  %192 = vmatprep.subr.bf16.mxu0 0
  %193 = vmatpush1.bf16.msra.mxu0 %v169
  %194 = vmatprep.subr.bf16.mxu0 0
  %195 = vmatpush1.bf16.msra.mxu0 0
  %196 = vmatprep.subr.bf16.mxu0 0
  %197 = vmatpush1.bf16.msra.mxu0 0
  %198 = vmatprep.subr.bf16.mxu0 0
  %199 = vmatpush1.bf16.msra.mxu0 0
  %200 = vmatprep.subr.bf16.mxu0 0
  %201 = vmatpush1.bf16.msra.mxu0 0
  %202 = vmatprep.subr.bf16.mxu0 0
  %203 = vmatpush1.bf16.msra.mxu0 0
  %204 = vmatprep.subr.bf16.mxu0 0
  %205 = vmatpush1.bf16.msra.mxu0 0
  %206 = vmatprep.subr.bf16.mxu0 0
  %207 = vmatpush1.bf16.msra.mxu0 0
  %208 = vmatprep.subr.bf16.mxu0 0
  %209 = vmatpush1.bf16.msra.mxu0 0
  %210 = vmatprep.mubr.bf16.mxu0 0
  %211 = vmatmul.mubr.bf16.gmra.mrb[0].mxu0 %v106
  %v212 = vpop.f32.mrb[0].mxu0
  %v213 = vadd.f32 %v128, %v212
  %v214 = vpop.f32.mrb[0].mxu0
  %v215 = vpop.f32.mrb[0].mxu0
  %v216 = vadd.f32 %v128, %v215
  %v217 = vpop.f32.mrb[0].mxu0
  %218 = vdwg.mxu0
  %v219 = vmax.f32 %v213, 0.0
  %v220 = vmax.f32 %v216, 0.0
  %v221 = vld [vmem:[%s5] sm:$0x1]
  %v223 = vlaneseq
  %v224 = vshrl.u32 %v223, 7
  %v225 = vsub.s32 0, %v224
  %v226 = vrot.slane %v221, %v225
  %v228 = vmul.f32 %v219, %v226
  %v229 = vmul.f32 %v220, %v226
  %vm230 = vcmask 523264
  %v231 = vsel %vm230, %v228, 0.0
  %232 = vadd.xlane.f32.xlu0 %v231
  %v233 = vpop.xlane.xlu0 %232
  %v234 = vsel %vm230, %v229, 0.0
  %235 = vadd.xlane.f32.xlu0 %v234
  %v236 = vpop.xlane.xlu0 %235
  %v237 = vld [vmem:[#allocation2] sm:$0x1]
  %v239 = vlaneseq
  %v240 = vshrl.u32 %v239, 7
  %v241 = vsub.s32 0, %v240
  %v242 = vrot.slane %v237, %v241
  %v244 = vadd.f32 %v233, %v242
  %v245 = vadd.f32 %v236, %v242
  %v246 = vxor.u32 %v244, 2147483648
  %v247 = vxor.u32 %v245, 2147483648
  %v248 = vmul.f32 %v246, 1.442695
  %v249 = vpow.pop %v248
  %v250 = vmul.f32 %v247, 1.442695
  %v251 = vpow.pop %v250
  %v252 = vadd.f32 %v249, 1.0
  %v253 = vadd.f32 %v251, 1.0
  %v254 = vrcp.pop %v252
  %v255 = vmul.f32 1.0, %v254
  %v256 = vrcp.pop %v253
  %v257 = vmul.f32 1.0, %v256
  %vm258 = vcmask 7168
  %259 = vst.msk [vmem:[%s7] sm:$0xff] %vm258, %v255
  %260 = vst.msk [vmem:[%s7 + $0x8] sm:$0xff] %vm258, %v257
  // Predicated region
  $region30: #{meta_model_forward.1} parent=0 // pred_check
    _
  $region31: #{meta_model_forward.1} parent=0 // pred_check_branch
    %262 = sbr.rel (0) target = $region33
  $region32: #{meta_model_forward.1} parent=0 // pred_region
    _
  $region33: #{meta_model_forward.1} parent=0 // pred_fallthru
    _
  // Predicated region
  $region34: #{meta_model_forward.1} parent=0 // pred_check
    _
  $region35: #{meta_model_forward.1} parent=0 // pred_check_branch
    %264 = sbr.rel (0) target = $region37
  $region36: #{meta_model_forward.1} parent=0 // pred_region
    _
  $region37: #{meta_model_forward.1} parent=0 // pred_fallthru
    _

</llo_original>
